<compile_context>
chip_gen: v7x
topology: tpu7x:2x2x1
jax: 0.10.0
libtpu: 0.0.40
codegen_flags: <defaults>
</compile_context>

<pallas_src>
import numpy as np
import jax
import jax.numpy as jnp
from jax.experimental import pallas as pl
from jax.experimental.pallas import tpu as pltpu


def _build_positional_table(max_len: int, dim: int) -> jnp.ndarray:
    """Mirrors PositionalEncoding.__init__, but stores ONE copy (max_len, dim)."""
    pos = jnp.arange(0, max_len, dtype=jnp.float32).reshape(-1, 1)              # (max_len, 1)
    div = jnp.power(10000.0, jnp.arange(0, dim, 2, dtype=jnp.float32) / dim)    # (dim//2,)
    angles = pos / div                                                           # (max_len, dim//2)
    P = jnp.zeros((max_len, dim), dtype=jnp.float32)
    P = P.at[:, 0::2].set(jnp.sin(angles))
    P = P.at[:, 1::2].set(jnp.cos(angles))
    return P


def _add_pe_kernel(x_ref, p_ref, o_ref):
    # (block_rows, T*D) + (1, T*D): sublane-broadcast add on the VPU.
    o_ref[...] = x_ref[...] + p_ref[...]


def _pick_block_rows(rows: int, cols: int, itemsize: int) -> int:
    """Bandwidth-friendly row tile, safe under double buffering on every
    generation (incl. v7x's 64 MiB VMEM / 32 MiB default scoped limit)."""
    target_bytes = 2 * 1024 * 1024                      # ~2 MiB per block
    br = max(1, target_bytes // max(1, cols * itemsize))
    if br >= rows:
        # One block covers everything.  If there is enough work, still split
        # into >=2 blocks so both v7x TensorCores get a share.
        if rows >= 16:
            return max(8, ((rows // 2) // 8) * 8)
        return rows                                     # full extent -> always legal
    return min(rows, max(8, (br // 8) * 8))             # keep f32 sublane-aligned


def positional_encoding_forward(x: jnp.ndarray, P: jnp.ndarray) -> jnp.ndarray:
    """
    x: (N, T, D) float32
    P: (max_len, D) float32 positional table (T <= max_len)
    returns x + P[None, :T, :]   (nn.Dropout(p=0) is the identity)
    """
    N, T, D = x.shape
    cols = T * D

    # Lane-dense 2D views.  Every row of x2 receives the same PE vector, so a
    # single (1, cols) block serves the whole grid.
    x2 = x.reshape(N, cols)
    p2 = P[:T, :].reshape(1, cols)          # tiny (T, D) slice, no N-copy broadcast

    br = _pick_block_rows(N, cols, x.dtype.itemsize)
    grid = (pl.cdiv(N, br),)

    out2 = pl.pallas_call(
        _add_pe_kernel,
        out_shape=jax.ShapeDtypeStruct((N, cols), x.dtype),
        grid_spec=pltpu.PrefetchScalarGridSpec(
            num_scalar_prefetch=0,
            grid=grid,
            in_specs=[
                pl.BlockSpec((br, cols), lambda i: (i, 0)),
                # Constant block index -> fetched once, stays VMEM-resident.
                pl.BlockSpec((1, cols), lambda i: (0, 0)),
            ],
            out_specs=pl.BlockSpec((br, cols), lambda i: (i, 0)),
        ),
        compiler_params=pltpu.CompilerParams(
            dimension_semantics=("parallel",),
            vmem_limit_bytes=32 * 1024 * 1024,
        ),
    )(x2, p2)
    return out2.reshape(N, T, D)


if __name__ == "__main__":
    # Small shapes consistent with the module: N = nagents, T = seq, D = dim.
    nagents, max_len, dim = 2, 16, 32
    T = 8

    # TODO(synk): nn.Dropout with nonzero p (training-mode RNG masking) is not
    # implemented; the module default p=0 makes dropout the identity.

    key = jax.random.PRNGKey(0)
    x = jax.random.normal(key, (nagents, T, dim), dtype=jnp.float32)
    P = _build_positional_table(max_len, dim)

    y = positional_encoding_forward(x, P)
    y = jax.block_until_ready(y)

    # Reference check against plain JAX semantics (same as the PyTorch forward).
    y_ref = x + P[None, :T, :]
    np.testing.assert_allclose(np.asarray(y), np.asarray(y_ref), rtol=1e-6, atol=1e-6)

    print("KERNEL_OK")
</pallas_src>

<mosaic_0001>
module attributes {stable_mosaic.version = 11 : i64} {
  func.func @_add_pe_kernel(%arg0: i32, %arg1: memref<2x256xf32, #tpu.memory_space<vmem>>, %arg2: memref<1x256xf32, #tpu.memory_space<vmem>>, %arg3: memref<2x256xf32, #tpu.memory_space<vmem>>) attributes {dimension_semantics = [#tpu.dimension_semantics<parallel>], iteration_bounds = array<i64: 1>, scalar_prefetch = 0 : i64, scratch_operands = 0 : i64, tpu.core_type = #tpu.core_type<tc>, window_params = [{transform_indices = @transform_0, window_bounds = array<i64: 2, 256>}, {pipeline_mode = #tpu.pipeline_mode<synchronous>, transform_indices = @transform_1, window_bounds = array<i64: 1, 256>}, {transform_indices = @transform_2, window_bounds = array<i64: 2, 256>}]} {
    %c0 = arith.constant 0 : index
    %c0_0 = arith.constant 0 : index
    %0 = vector.load %arg1[%c0, %c0_0] : memref<2x256xf32, #tpu.memory_space<vmem>>, vector<2x256xf32>
    %c0_1 = arith.constant 0 : index
    %c0_2 = arith.constant 0 : index
    %1 = vector.load %arg2[%c0_1, %c0_2] : memref<1x256xf32, #tpu.memory_space<vmem>>, vector<1x256xf32>
    %2 = vector.broadcast %1 : vector<1x256xf32> to vector<2x256xf32>
    %3 = arith.addf %0, %2 : vector<2x256xf32>
    %c0_3 = arith.constant 0 : index
    %c0_4 = arith.constant 0 : index
    %4 = vector.load %arg3[%c0_3, %c0_4] : memref<2x256xf32, #tpu.memory_space<vmem>>, vector<2x256xf32>
    tpu.vector_store %arg3[%c0_3, %c0_4], %3 {strides = array<i32>} : memref<2x256xf32, #tpu.memory_space<vmem>>, vector<2x256xf32>,
    return
  }
  func.func @transform_0(%arg0: i32) -> (i32, i32) {
    %c0_i32 = arith.constant 0 : i32
    %c0_i32_0 = arith.constant 0 : i32
    return %arg0, %c0_i32 : i32, i32
  }
  func.func @transform_1(%arg0: i32) -> (i32, i32) {
    %c0_i32 = arith.constant 0 : i32
    %c0_i32_0 = arith.constant 0 : i32
    %c0_i32_1 = arith.constant 0 : i32
    return %c0_i32, %c0_i32_0 : i32, i32
  }
  func.func @transform_2(%arg0: i32) -> (i32, i32) {
    %c0_i32 = arith.constant 0 : i32
    %c0_i32_0 = arith.constant 0 : i32
    return %arg0, %c0_i32 : i32, i32
  }
}

</mosaic_0001>

<llo_original>
// kernel: tpu_custom_call.1
$region0: #{tpu_custom_call.1}
  #allocation0 [shape = 'u32[]', space=smem, size = 0x4, offset = 0x4, fixed_abs, tag = 'smem constant byte address 0x4 - core index']
  #allocation1 [shape = 'u32[144,128]{1,0:T(1,128)}', space=vmem, size = 0x12000, scoped, tag = 'internal scratch']
  %s0 = inlined_call_operand.hbm [shape: f32[2,256], index: 0, kind: input, shape index: {}]
  %s1 = inlined_call_operand.vmem [shape: f32[1,256], index: 1, kind: input, shape index: {}]
  %s2 = inlined_call_operand.hbm [shape: f32[2,256], index: 2, kind: output, shape index: {}]
  %s3 = sld [smem:[#allocation0]]
  $region22: #{tpu_custom_call.1} parent=0
    _
  %s5 = ssub.s32 1, %s3
  %s6 = scalar_select 0, %s5, %s3
  $region1: #{tpu_custom_call.1} parent=0
    #allocation2 [shape = 'u8[2048]{0}', space=vmem, size = 0x800, scoped, tag = 'input window, operand 0, single buffered']
    #allocation3 [shape = 's32[1]{0}', space=sflag, size = 0x4, scoped, tag = 'scoped memory for tpu_custom_call.1']
    #allocation4 [shape = 's32[1]{0}', space=sflag, size = 0x4, scoped, tag = 'scoped memory for tpu_custom_call.1']
    #allocation5 [shape = 'u8[2048]{0}', space=vmem, size = 0x800, scoped, tag = 'output window, operand 0, single buffered']
    %7 = vsyncpa [#allocation3], 0
    %8 = vsyncpa [#allocation4], 0
    // Predicated region
    $region2: #{tpu_custom_call.1} parent=1 // pred_check
      _
    $region3: #{tpu_custom_call.1} parent=1 // pred_check_branch
      %10 = sbr.rel (0) target = $region5
    $region4: #{tpu_custom_call.1} parent=1 // pred_region
      %s12 = ssub.s32 64, 64
      %13 = vsyncadd [#allocation3], %s12
      %s15 = sshll.u32 [#allocation2], 4
      %s16 = int_to_ptr.vmem [resolvable:$true] %s15
      %18 = dma.hbm_to_vmem [thread:$0]  %s0, 64, %s16, [#allocation3]
    $region5: #{tpu_custom_call.1} parent=1 // pred_fallthru
      _
    // Predicated region
    $region6: #{tpu_custom_call.1} parent=1 // pred_check
      _
    $region7: #{tpu_custom_call.1} parent=1 // pred_check_branch
      %20 = sbr.rel (0) target = $region9
    $region8: #{tpu_custom_call.1} parent=1 // pred_region
      _
    $region9: #{tpu_custom_call.1} parent=1 // pred_fallthru
      _
    // Predicated region
    $region10: #{tpu_custom_call.1} parent=1 // pred_check
      _
    $region11: #{tpu_custom_call.1} parent=1 // pred_check_branch
      %22 = sbr.rel (0) target = $region13
    $region12: #{tpu_custom_call.1} parent=1 // pred_region
      %23 = dma.done [#allocation3], 64
    $region13: #{tpu_custom_call.1} parent=1 // pred_fallthru
      _
    %v24 = vld [vmem:[#allocation2] sm:$0xf]
    %v25 = vld [vmem:[%s1] sm:$0x3]
    %v27 = vlaneseq
    %v28 = vshrl.u32 %v27, 7
    %v29 = vsub.s32 0, %v28
    %v30 = vrot.slane %v25, %v29
    %v31 = vlaneseq
    %v32 = vshrl.u32 %v31, 7
    %v33 = vsub.s32 1, %v32
    %v34 = vrot.slane %v25, %v33
    %v35 = vcombine.low %v30, %v34
    %v37 = vunpack.c.l.s4 1983009808
    %v38 = vunpack.c.0.s8 %v37
    %v39 = vlaneseq
    %v40 = vshrl.u32 %v39, 7
    %v41 = vsub.s32 %v38, %v40
    %v42 = vrot.slane %v35, %v41
    %v44 = vadd.f32 %v24, %v42
    %45 = vst [vmem:[#allocation5] sm:$0xf] %v44
    // Predicated region
    $region14: #{tpu_custom_call.1} parent=1 // pred_check
      _
    $region15: #{tpu_custom_call.1} parent=1 // pred_check_branch
      %47 = sbr.rel (0) target = $region17
    $region16: #{tpu_custom_call.1} parent=1 // pred_region
      %s49 = ssub.s32 64, 64
      %50 = vsyncadd [#allocation4], %s49
      %s52 = sshll.u32 [#allocation5], 4
      %s53 = int_to_ptr.vmem [resolvable:$true] %s52
      %55 = dma.vmem_to_hbm [thread:$0]  %s53, 64, %s2, [#allocation4]
    $region17: #{tpu_custom_call.1} parent=1 // pred_fallthru
      _
    // Predicated region
    $region18: #{tpu_custom_call.1} parent=1 // pred_check
      _
    $region19: #{tpu_custom_call.1} parent=1 // pred_check_branch
      %57 = sbr.rel (0) target = $region21
    $region20: #{tpu_custom_call.1} parent=1 // pred_region
      %58 = dma.done [#allocation4], 64
    $region21: #{tpu_custom_call.1} parent=1 // pred_fallthru
      _
    %59 = vsyncpa [#allocation3], 1
    %60 = vsyncpa [#allocation4], 1

</llo_original>
